<compile_context>
chip_gen: v5e
topology: v5e:2x2
jax: 0.10.0
libtpu: 0.0.40
codegen_flags: <defaults>
</compile_context>

<pallas_src>
import numpy as np
import jax
import jax.numpy as jnp
from jax.experimental import pallas as pl
from jax.experimental.pallas import tpu as pltpu


def _round_up(x, m):
    return ((x + m - 1) // m) * m


def _hierarchical_loss_kernel(logits_ref, tgt_ref, gate_ref, wmask_ref, out_ref):
    """One grid step == one tile of TB rows.

    logits_ref: (TB, C)  input dtype (bf16/f32...), upcast to f32 in-kernel.
    tgt_ref:    (TB, 1)  int32 target class per row.
    gate_ref:   (TB, P)  f32 host-precomputed membership gate
                         (gate[r, p] = 1 iff target_r is a child of group p).
    wmask_ref:  (P, C)   f32 folded group-weight slab:
                         weight_factor / |children_p| at every child column.
                         Constant block index -> fetched once, stays resident.
    out_ref:    (TB, 1)  f32 per-row losses.
    """
    logits = logits_ref[...].astype(jnp.float32)                 # (TB, C)
    tb, c = logits.shape

    # Numerically stable log-sum-exp.  Note -log_softmax = lse - z exactly
    # (the max shift cancels), so we never materialize neg_logp.
    m = jnp.max(logits, axis=-1, keepdims=True)                  # (TB, 1)
    z = logits - m                                               # (TB, C)
    lse = jnp.log(jnp.sum(jnp.exp(z), axis=-1, keepdims=True))   # (TB, 1)

    # One-hot built in-kernel: no (B, C) one-hot input, no extra HBM traffic.
    cls = jax.lax.broadcasted_iota(jnp.int32, (tb, c), 1)
    onehot = (cls == tgt_ref[...]).astype(jnp.float32)           # (TB, C)

    # Per-row folded group weights on the MXU: (TB, P) @ (P, C).
    group_w = jnp.dot(gate_ref[...], wmask_ref[...],
                      preferred_element_type=jnp.float32)        # (TB, C)

    # Effective per-class weight: base CE one-hot + weight_factor * mean over
    # children of every group containing the target (pre-folded on the host).
    w = onehot + group_w                                         # (TB, C)

    # loss_r = sum_c w[r,c] * (lse[r] - z[r,c])
    #        = lse[r] * rowsum(w) - rowsum(w * z)
    wsum = jnp.sum(w, axis=-1, keepdims=True)                    # (TB, 1)
    wz = jnp.sum(w * z, axis=-1, keepdims=True)                  # (TB, 1)
    out_ref[...] = lse * wsum - wz                               # (TB, 1)


def _build_group_weight_slab(hierarchy, num_classes, weight_factor):
    """(P, C) slab with weight_factor/len(children) at every child column.

    Duplicate child ids accumulate (matches torch's mean over the raw children
    tensor).  P is padded to a multiple of 8 with zero rows for a friendlier
    sublane layout; the padding rows are numerically inert.
    """
    groups = [list(children) for children in hierarchy.values() if len(children) > 0]
    n_groups = max(len(groups), 1)
    n_pad = _round_up(n_groups, 8)
    slab = np.zeros((n_pad, num_classes), np.float32)
    for p, children in enumerate(groups):
        per_child = float(weight_factor) / float(len(children))
        for ccls in children:
            slab[p, int(ccls)] += per_child
    return jnp.asarray(slab)


def hierarchical_loss_batched(logits, targets, hierarchy, weight_factor=0.5):
    """Per-example hierarchical loss. logits: (B, C), targets: (B,) -> (B,) f32."""
    logits = jnp.asarray(logits)
    if logits.ndim == 1:
        logits = logits[None, :]
    if not jnp.issubdtype(logits.dtype, jnp.floating):
        logits = logits.astype(jnp.float32)          # ints -> f32; floats untouched
    B, C = logits.shape
    targets = jnp.asarray(targets, jnp.int32).reshape(B)

    # Best-effort host check (torch CrossEntropyLoss would raise on a bad
    # target; the kernel would silently drop the base CE term instead).
    try:
        t_host = np.asarray(targets)
    except Exception:
        t_host = None                                # traced targets: skip
    if t_host is not None and ((t_host < 0).any() or (t_host >= C).any()):
        raise ValueError(f"targets must be in [0, {C})")

    wslab = _build_group_weight_slab(hierarchy, C, weight_factor)
    P = wslab.shape[0]

    # Group-membership gate computed with plain XLA outside the kernel:
    # gate[b, p] = 1.0 iff targets[b] is a child of group p (trivial gather).
    gate = (wslab.T[targets] != 0.0).astype(jnp.float32)          # (B, P)
    tgt_col = targets[:, None]                                    # (B, 1)

    # ---- tile selection -----------------------------------------------------
    itemsize = jnp.dtype(logits.dtype).itemsize
    tb = 256 if B > 128 else 128                  # 128-aligned for large B (MXU)
    tb = max(8, min(tb, _round_up(B, 8)))         # don't over-pad tiny batches

    vmem_budget = 24 * 1024 * 1024                # headroom under 32 MiB default

    def _vmem_need(t):
        # double-buffered per-step blocks + resident (double-buffered) slab + out
        return 2 * (t * C * itemsize + t * 4 + t * P * 4 + t * 4) + 2 * P * C * 4

    while tb > 8 and _vmem_need(tb) > vmem_budget:
        tb //= 2
    tb = max(8, (tb // 8) * 8)

    B_pad = _round_up(B, tb)
    pad = B_pad - B
    if pad:
        logits = jnp.pad(logits, ((0, pad), (0, 0)))
        tgt_col = jnp.pad(tgt_col, ((0, pad), (0, 0)))
        gate = jnp.pad(gate, ((0, pad), (0, 0)))

    grid = (pl.cdiv(B_pad, tb),)

    need = _vmem_need(tb)
    vmem_limit = None
    if need > 32 * 1024 * 1024:
        # Only raise when needed; cap at v7x's 64 MiB physical VMEM.
        vmem_limit = int(min(need * 5 // 4, 64 * 1024 * 1024))

    out = pl.pallas_call(
        _hierarchical_loss_kernel,
        out_shape=jax.ShapeDtypeStruct((B_pad, 1), jnp.float32),
        grid=grid,
        in_specs=[
            pl.BlockSpec((tb, C), lambda i: (i, 0)),   # logits tile
            pl.BlockSpec((tb, 1), lambda i: (i, 0)),   # targets tile
            pl.BlockSpec((tb, P), lambda i: (i, 0)),   # membership gate tile
            # Constant block index: fetched once, resident across the grid.
            # TODO(synk): single-buffer this constant slab (pipeline_mode=
            # pl.Buffered(1)) once that path is reliable across jax versions;
            # its double-buffered footprint (2*P*C*4 B) is small anyway.
            pl.BlockSpec((P, C), lambda i: (0, 0)),
        ],
        out_specs=pl.BlockSpec((tb, 1), lambda i: (i, 0)),
        compiler_params=pltpu.CompilerParams(
            # Each grid step touches disjoint output blocks -> safe to shard
            # the batch-tile axis across TensorCores (2x on v7x, no-op 1-TC).
            dimension_semantics=("parallel",),
            vmem_limit_bytes=vmem_limit,
        ),
    )(logits, tgt_col, gate, wslab)

    return out[:B, 0]


def hierarchical_loss(logits, target, hierarchy, weight_factor=0.5):
    """Exact equivalent of the PyTorch module forward (batch of 1, scalar target)."""
    logits2 = jnp.asarray(logits).reshape(1, -1)
    target = jnp.asarray(target, jnp.int32).reshape(1)
    return hierarchical_loss_batched(logits2, target, hierarchy, weight_factor)[0]


def _reference_loss(logits_row, target, hierarchy, weight_factor=0.5):
    """Pure-JAX reference mirroring the PyTorch module semantics."""
    logp = jax.nn.log_softmax(jnp.asarray(logits_row, jnp.float32).reshape(-1))
    loss = -logp[target]
    for _, children in hierarchy.items():
        if int(target) in [int(c) for c in children]:
            loss = loss + weight_factor * jnp.mean(-logp[jnp.asarray(children)])
    return loss


if __name__ == "__main__":
    key = jax.random.PRNGKey(0)
    num_classes = 10
    hierarchy = {0: [0, 1, 2, 3], 1: [4, 5, 6], 2: [7, 8, 9]}
    weight_factor = 0.5

    k1, k2 = jax.random.split(key)

    # Module-exact case: batch of 1, scalar target (the module calls targets.item()).
    logits1 = jax.random.normal(k1, (1, num_classes), dtype=jnp.float32)
    target1 = 5
    loss1 = jax.block_until_ready(
        hierarchical_loss(logits1, target1, hierarchy, weight_factor))
    ref1 = _reference_loss(logits1, target1, hierarchy, weight_factor)
    np.testing.assert_allclose(np.asarray(loss1), np.asarray(ref1),
                               rtol=1e-5, atol=1e-5)

    # Batched case with bf16 logits (no host upcast: the kernel upcasts in VMEM).
    B = 8
    logitsB = jax.random.normal(k2, (B, num_classes), dtype=jnp.bfloat16)
    targetsB = np.array([5, 0, 9, 3, 7, 1, 6, 2], dtype=np.int32)
    lossB = jax.block_until_ready(
        hierarchical_loss_batched(logitsB, targetsB, hierarchy, weight_factor))
    refB = np.stack([
        np.asarray(_reference_loss(logitsB[b], int(targetsB[b]), hierarchy,
                                   weight_factor))
        for b in range(B)
    ])
    np.testing.assert_allclose(np.asarray(lossB), refB, rtol=1e-5, atol=1e-5)

    print("KERNEL_OK")
</pallas_src>

<mosaic_0001>
module attributes {stable_mosaic.version = 11 : i64} {
  func.func @_hierarchical_loss_kernel(%arg0: i32, %arg1: memref<8x10xf32, #tpu.memory_space<vmem>>, %arg2: memref<8x1xi32, #tpu.memory_space<vmem>>, %arg3: memref<8x8xf32, #tpu.memory_space<vmem>>, %arg4: memref<8x10xf32, #tpu.memory_space<vmem>>, %arg5: memref<8x1xf32, #tpu.memory_space<vmem>>) attributes {dimension_semantics = [#tpu.dimension_semantics<parallel>], iteration_bounds = array<i64: 1>, scalar_prefetch = 0 : i64, scratch_operands = 0 : i64, tpu.core_type = #tpu.core_type<tc>, window_params = [{transform_indices = @transform_0, window_bounds = array<i64: 8, 10>}, {transform_indices = @transform_1, window_bounds = array<i64: 8, 1>}, {transform_indices = @transform_2, window_bounds = array<i64: 8, 8>}, {pipeline_mode = #tpu.pipeline_mode<synchronous>, transform_indices = @transform_3, window_bounds = array<i64: 8, 10>}, {transform_indices = @transform_4, window_bounds = array<i64: 8, 1>}]} {
    %c0 = arith.constant 0 : index
    %c0_0 = arith.constant 0 : index
    %0 = vector.load %arg1[%c0, %c0_0] : memref<8x10xf32, #tpu.memory_space<vmem>>, vector<8x10xf32>
    %cst = arith.constant dense<0xFF800000> : vector<8xf32>
    %1 = vector.multi_reduction <maximumf>, %0, %cst [1] : vector<8x10xf32> to vector<8xf32>
    %2 = vector.shape_cast %1 : vector<8xf32> to vector<8x1xf32>
    %3 = vector.broadcast %2 : vector<8x1xf32> to vector<8x10xf32>
    %4 = arith.subf %0, %3 : vector<8x10xf32>
    %5 = math.exp %4 : vector<8x10xf32>
    %cst_1 = arith.constant dense<0.000000e+00> : vector<8xf32>
    %6 = vector.multi_reduction <add>, %5, %cst_1 [1] : vector<8x10xf32> to vector<8xf32>
    %7 = vector.shape_cast %6 : vector<8xf32> to vector<8x1xf32>
    %8 = math.log %7 : vector<8x1xf32>
    %9 = tpu.iota {dimensions = array<i32: 1>} : vector<8x10xi32>
    %c0_2 = arith.constant 0 : index
    %c0_3 = arith.constant 0 : index
    %10 = vector.load %arg2[%c0_2, %c0_3] : memref<8x1xi32, #tpu.memory_space<vmem>>, vector<8x1xi32>
    %11 = vector.broadcast %10 : vector<8x1xi32> to vector<8x10xi32>
    %12 = arith.cmpi eq, %9, %11 : vector<8x10xi32>
    %13 = arith.extui %12 : vector<8x10xi1> to vector<8x10xi32>
    %14 = arith.sitofp %13 : vector<8x10xi32> to vector<8x10xf32>
    %c0_4 = arith.constant 0 : index
    %c0_5 = arith.constant 0 : index
    %15 = vector.load %arg3[%c0_4, %c0_5] : memref<8x8xf32, #tpu.memory_space<vmem>>, vector<8x8xf32>
    %c0_6 = arith.constant 0 : index
    %c0_7 = arith.constant 0 : index
    %16 = vector.load %arg4[%c0_6, %c0_7] : memref<8x10xf32, #tpu.memory_space<vmem>>, vector<8x10xf32>
    %cst_8 = arith.constant dense<0.000000e+00> : vector<8x10xf32>
    %17 = tpu.matmul %15, %16, %cst_8 {dimension_numbers = #tpu.dot_dimension_numbers<[1], [0], [0], [1], [0, 0, 1, 1], [], []>} : vector<8x8xf32>, vector<8x10xf32>, vector<8x10xf32> -> vector<8x10xf32>
    %18 = arith.addf %14, %17 : vector<8x10xf32>
    %cst_9 = arith.constant dense<0.000000e+00> : vector<8xf32>
    %19 = vector.multi_reduction <add>, %18, %cst_9 [1] : vector<8x10xf32> to vector<8xf32>
    %20 = vector.shape_cast %19 : vector<8xf32> to vector<8x1xf32>
    %21 = arith.mulf %18, %4 : vector<8x10xf32>
    %cst_10 = arith.constant dense<0.000000e+00> : vector<8xf32>
    %22 = vector.multi_reduction <add>, %21, %cst_10 [1] : vector<8x10xf32> to vector<8xf32>
    %23 = vector.shape_cast %22 : vector<8xf32> to vector<8x1xf32>
    %24 = arith.mulf %8, %20 : vector<8x1xf32>
    %25 = arith.subf %24, %23 : vector<8x1xf32>
    %c0_11 = arith.constant 0 : index
    %c0_12 = arith.constant 0 : index
    %26 = vector.load %arg5[%c0_11, %c0_12] : memref<8x1xf32, #tpu.memory_space<vmem>>, vector<8x1xf32>
    tpu.vector_store %arg5[%c0_11, %c0_12], %25 {strides = array<i32>} : memref<8x1xf32, #tpu.memory_space<vmem>>, vector<8x1xf32>,
    return
  }
  func.func @transform_0(%arg0: i32) -> (i32, i32) {
    %c0_i32 = arith.constant 0 : i32
    %c0_i32_0 = arith.constant 0 : i32
    return %arg0, %c0_i32 : i32, i32
  }
  func.func @transform_1(%arg0: i32) -> (i32, i32) {
    %c0_i32 = arith.constant 0 : i32
    %c0_i32_0 = arith.constant 0 : i32
    return %arg0, %c0_i32 : i32, i32
  }
  func.func @transform_2(%arg0: i32) -> (i32, i32) {
    %c0_i32 = arith.constant 0 : i32
    %c0_i32_0 = arith.constant 0 : i32
    return %arg0, %c0_i32 : i32, i32
  }
  func.func @transform_3(%arg0: i32) -> (i32, i32) {
    %c0_i32 = arith.constant 0 : i32
    %c0_i32_0 = arith.constant 0 : i32
    %c0_i32_1 = arith.constant 0 : i32
    return %c0_i32, %c0_i32_0 : i32, i32
  }
  func.func @transform_4(%arg0: i32) -> (i32, i32) {
    %c0_i32 = arith.constant 0 : i32
    %c0_i32_0 = arith.constant 0 : i32
    return %arg0, %c0_i32 : i32, i32
  }
}

</mosaic_0001>

<llo_original>
// kernel: tpu_custom_call.1
$region0: #{tpu_custom_call.1}
  #allocation0 [shape = 'u32[]', space=smem, size = 0x4, offset = 0x4, fixed_abs, tag = 'smem constant byte address 0x4 - core index']
  #allocation1 [shape = 'u32[72,128]{1,0:T(1,128)}', space=vmem, size = 0x9000, scoped, tag = 'internal scratch']
  %s0 = inlined_call_operand.vmem [shape: f32[8,10], index: 0, kind: input, shape index: {}]
  %s1 = inlined_call_operand.vmem [shape: s32[8,1], index: 1, kind: input, shape index: {}]
  %s2 = inlined_call_operand.hbm [shape: f32[8,8], index: 2, kind: input, shape index: {}]
  %s3 = inlined_call_operand.hbm [shape: f32[8,10], index: 3, kind: input, shape index: {}]
  %s4 = inlined_call_operand.vmem [shape: f32[8,1], index: 4, kind: output, shape index: {}]
  %s5 = sld [smem:[#allocation0]]
  $region34: #{tpu_custom_call.1} parent=0
    _
  %s7 = ssub.s32 1, %s5
  %s8 = scalar_select 0, %s7, %s5
  $region1: #{tpu_custom_call.1} parent=0
    #allocation2 [shape = 'u8[4096]{0}', space=vmem, size = 0x1000, scoped, tag = 'input window, operand 2, single buffered']
    #allocation3 [shape = 's32[1]{0}', space=sflag, size = 0x4, scoped, tag = 'scoped memory for tpu_custom_call.1']
    #allocation4 [shape = 'u8[4096]{0}', space=vmem, size = 0x1000, scoped, tag = 'input window, operand 3, single buffered']
    #allocation5 [shape = 's32[1]{0}', space=sflag, size = 0x4, scoped, tag = 'scoped memory for tpu_custom_call.1']
    %9 = vsyncpa [#allocation3], 0
    %10 = vsyncpa [#allocation5], 0
    // Predicated region
    $region2: #{tpu_custom_call.1} parent=1 // pred_check
      _
    $region3: #{tpu_custom_call.1} parent=1 // pred_check_branch
      %12 = sbr.rel (0) target = $region5
    $region4: #{tpu_custom_call.1} parent=1 // pred_region
      _
    $region5: #{tpu_custom_call.1} parent=1 // pred_fallthru
      _
    // Predicated region
    $region6: #{tpu_custom_call.1} parent=1 // pred_check
      _
    $region7: #{tpu_custom_call.1} parent=1 // pred_check_branch
      %14 = sbr.rel (0) target = $region9
    $region8: #{tpu_custom_call.1} parent=1 // pred_region
      _
    $region9: #{tpu_custom_call.1} parent=1 // pred_fallthru
      _
    // Predicated region
    $region10: #{tpu_custom_call.1} parent=1 // pred_check
      _
    $region11: #{tpu_custom_call.1} parent=1 // pred_check_branch
      %16 = sbr.rel (0) target = $region13
    $region12: #{tpu_custom_call.1} parent=1 // pred_region
      %18 = vsyncadd [#allocation3], 0
      %s20 = sshll.u32 %s2, 4
      %s21 = int_to_ptr.hbm [resolvable:$true] %s20
      %s22 = sshll.u32 [#allocation2], 4
      %s23 = int_to_ptr.vmem [resolvable:$true] %s22
      %25 = dma.hbm_to_vmem [thread:$0]  %s21, 128, %s23, [#allocation3]
    $region13: #{tpu_custom_call.1} parent=1 // pred_fallthru
      _
    // Predicated region
    $region14: #{tpu_custom_call.1} parent=1 // pred_check
      _
    $region15: #{tpu_custom_call.1} parent=1 // pred_check_branch
      %27 = sbr.rel (0) target = $region17
    $region16: #{tpu_custom_call.1} parent=1 // pred_region
      %29 = vsyncadd [#allocation5], 0
      %s31 = sshll.u32 %s3, 4
      %s32 = int_to_ptr.hbm [resolvable:$true] %s31
      %s33 = sshll.u32 [#allocation4], 4
      %s34 = int_to_ptr.vmem [resolvable:$true] %s33
      %36 = dma.hbm_to_vmem [thread:$0]  %s32, 128, %s34, [#allocation5]
    $region17: #{tpu_custom_call.1} parent=1 // pred_fallthru
      _
    // Predicated region
    $region18: #{tpu_custom_call.1} parent=1 // pred_check
      _
    $region19: #{tpu_custom_call.1} parent=1 // pred_check_branch
      %38 = sbr.rel (0) target = $region21
    $region20: #{tpu_custom_call.1} parent=1 // pred_region
      %40 = dma.done [#allocation3], 128
    $region21: #{tpu_custom_call.1} parent=1 // pred_fallthru
      _
    // Predicated region
    $region22: #{tpu_custom_call.1} parent=1 // pred_check
      _
    $region23: #{tpu_custom_call.1} parent=1 // pred_check_branch
      %42 = sbr.rel (0) target = $region25
    $region24: #{tpu_custom_call.1} parent=1 // pred_region
      %44 = dma.done [#allocation5], 128
    $region25: #{tpu_custom_call.1} parent=1 // pred_fallthru
      _
    %v45 = vld [vmem:[%s0] sm:$0xff]
    %vm46 = vcmask 80896
    %v47 = vsel %vm46, %v45, -inf
    %48 = vmax.xlane.f32.xlu0 %v47
    %v49 = vpop.xlane.xlu0 %48
    %v50 = vsub.f32 %v45, %v49
    %v51 = vmul.f32 %v50, 1.442695
    %v52 = vpow.pop %v51
    %v53 = vsel %vm46, %v52, 0.0
    %54 = vadd.xlane.f32.xlu0 %v53
    %v55 = vpop.xlane.xlu0 %54
    %v56 = vlog2.pop %v55
    %v57 = vmul.f32 %v56, 0.6931472
    %v58 = vlaneseq
    %v59 = vand.u32 %v58, 127
    %v60 = vld [vmem:[%s1] sm:$0xff]
    %61 = vset.pattern.permute.xlu0 0
    %62 = vperm.xlu0 %61, %v60
    %v63 = vpop.permute.xlu0 %62
    %vm64 = vcmp.eq.s32.totalorder %v59, %v63
    %v65 = vsel %vm64, 1, 0
    %v66 = vcvt.s32.f32 %v65
    %v67 = vld [vmem:[#allocation2] sm:$0xff]
    %v68 = vld [vmem:[#allocation4] sm:$0xff]
    %vm69 = vcmask 64512
    %v71 = vsel %vm69, %v67, 0
    %73 = vmatpush.msra.mxu0 0.0
    %74 = vmatpush.msra.mxu0 0.0
    %75 = vmatpush.msra.mxu0 0.0
    %76 = vmatpush.msra.mxu0 0.0
    %77 = vmatpush.msra.mxu0 0.0
    %78 = vmatpush.msra.mxu0 0.0
    %79 = vmatpush.msra.mxu0 0.0
    %80 = vmatpush.msra.mxu0 0.0
    %81 = vmatpush.msra.mxu0 0.0
    %82 = vmatpush.msra.mxu0 0.0
    %83 = vmatpush.msra.mxu0 0.0
    %84 = vmatpush.msra.mxu0 0.0
    %85 = vmatpush.msra.mxu0 0.0
    %86 = vmatpush.msra.mxu0 0.0
    %87 = vmatpush.msra.mxu0 0.0
    %88 = vmatpush.msra.mxu0 %v68
    %89 = vmatmul.f32.gmra.mxu0 %v71
    %v90 = vpop.f32.mrf.mxu0
    %v91 = vadd.f32 0.0, %v90
    %92 = vdwg.mxu0
    %v93 = vadd.f32 %v66, %v91
    %v94 = vsel %vm46, %v93, 0.0
    %95 = vadd.xlane.f32.xlu0 %v94
    %v96 = vpop.xlane.xlu0 %95
    %v97 = vmul.f32 %v93, %v50
    %v98 = vsel %vm46, %v97, 0.0
    %99 = vadd.xlane.f32.xlu0 %v98
    %v100 = vpop.xlane.xlu0 %99
    %v101 = vmul.f32 %v57, %v96
    %v102 = vsub.f32 %v101, %v100
    %vm103 = vcmask 7168
    %104 = vst.msk [vmem:[%s4] sm:$0xff] %vm103, %v102
    // Predicated region
    $region26: #{tpu_custom_call.1} parent=1 // pred_check
      _
    $region27: #{tpu_custom_call.1} parent=1 // pred_check_branch
      %106 = sbr.rel (0) target = $region29
    $region28: #{tpu_custom_call.1} parent=1 // pred_region
      _
    $region29: #{tpu_custom_call.1} parent=1 // pred_fallthru
      _
    // Predicated region
    $region30: #{tpu_custom_call.1} parent=1 // pred_check
      _
    $region31: #{tpu_custom_call.1} parent=1 // pred_check_branch
      %108 = sbr.rel (0) target = $region33
    $region32: #{tpu_custom_call.1} parent=1 // pred_region
      _
    $region33: #{tpu_custom_call.1} parent=1 // pred_fallthru
      _
    %109 = vsyncpa [#allocation3], 1
    %110 = vsyncpa [#allocation5], 1

</llo_original>
